<compile_context>
chip_gen: v5e
topology: v5e:2x2
jax: 0.10.0
libtpu: 0.0.40
codegen_flags: <defaults>
</compile_context>

<pallas_src>
import jax
import jax.numpy as jnp
from jax.experimental import pallas as pl
from jax.experimental.pallas import tpu as pltpu

_NEG_BIG = -1e30  # "-inf-safe" bias for padded softmax columns


def _round_up(n, m):
    return ((n + m - 1) // m) * m


def _activation(name):
    if name == "relu":
        return lambda h: jnp.maximum(h, 0.0)
    if name == "tanh":
        return jnp.tanh
    if name == "sigmoid":
        return lambda h: 1.0 / (1.0 + jnp.exp(-h))
    if name == "linear":
        return lambda h: h
    raise ValueError(f"unknown activation: {name}")


def _make_mlp_softmax_kernel(n_layers, activation):
    act = _activation(activation)

    def kernel(*refs):
        x_ref = refs[0]
        out_ref = refs[-1]
        wb_refs = refs[1:-1]

        h = x_ref[...]  # (TB, K_pad) bf16
        for li in range(n_layers):
            w = wb_refs[2 * li][...]        # bf16, VMEM-resident
            b = wb_refs[2 * li + 1][...]    # f32 (1, out)
            h = jnp.dot(h.astype(jnp.bfloat16), w,
                        preferred_element_type=jnp.float32) + b
            if li < n_layers - 1:
                h = act(h)

        # Numerically-stable softmax over the lane-dense (padded) logits.
        # Padded columns carry a -1e30 bias -> exp() == 0, so they do not
        # perturb the distribution over the real io_dim columns.
        m = jnp.max(h, axis=-1, keepdims=True)
        e = jnp.exp(h - m)
        denom = jnp.sum(e, axis=-1, keepdims=True)
        out_ref[...] = e * pl.reciprocal(denom, approx=True)

    return kernel


def ann_forward(x, params, *, activation="relu", tile_rows=1024):
    """Forward pass of the ANN.  x: [B, io_dim+1] f32 -> softmax probs [B, io_dim] f32."""
    n_layers = len(params)
    B, K = x.shape
    out_dim = params[-1][0].shape[1]

    # ---- tiling / padding decisions (all static Python) ---------------------
    TB = min(_round_up(tile_rows, 8), _round_up(B, 8))   # row tile, multiple of 8
    B_pad = _round_up(B, TB)                             # grid covers B exactly
    K_pad = _round_up(K, 8)                              # io_dim+1=17 -> 24
    N_pad = _round_up(out_dim, 128)                      # lane-dense output slab

    # x: pad rows/features with zeros, cast to bf16 (halves the dominant HBM stream).
    x_p = jnp.pad(x, ((0, B_pad - B), (0, K_pad - K))).astype(jnp.bfloat16)

    # weights -> bf16 (padded), biases -> f32 (last bias padded with -1e30).
    flat = []
    for li, (w, b) in enumerate(params):
        if li == 0:
            w = jnp.pad(w, ((0, K_pad - K), (0, 0)))
        if li == n_layers - 1:
            w = jnp.pad(w, ((0, 0), (0, N_pad - out_dim)))
            b = jnp.pad(b, ((0, 0), (0, N_pad - out_dim)),
                        constant_values=_NEG_BIG)
        flat.append(w.astype(jnp.bfloat16))
        flat.append(b.astype(jnp.float32))

    grid = (B_pad // TB,)

    x_spec = pl.BlockSpec((TB, K_pad), lambda i: (i, 0))
    resident_specs = [pl.BlockSpec(a.shape, lambda i: (0, 0)) for a in flat]
    out_spec = pl.BlockSpec((TB, N_pad), lambda i: (i, 0))

    # ---- explicit VMEM budget (v7x: 64 MiB physical / 32 MiB scoped default) -
    hidden_max = max([N_pad] + [int(w.shape[1]) for w, _ in params])
    vmem_bytes = 2 * TB * K_pad * 2            # double-buffered x (bf16)
    vmem_bytes += 2 * TB * N_pad * 4           # double-buffered out (f32)
    vmem_bytes += 2 * sum(int(a.size) * a.dtype.itemsize for a in flat)
    vmem_bytes += 6 * TB * hidden_max * 4      # intermediate activations headroom
    vmem_limit = int(min(max(2 * vmem_bytes, 4 << 20), 32 << 20))

    # ---- cost estimate hint for the XLA scheduler ---------------------------
    dims = [K_pad] + [int(w.shape[1]) for w, _ in params[:-1]] + [N_pad]
    flops = 2 * B_pad * sum(dims[i] * dims[i + 1] for i in range(len(dims) - 1))
    cost = pl.CostEstimate(
        flops=int(flops),
        transcendentals=int(B_pad * N_pad),
        bytes_accessed=int(x_p.size * 2 + B_pad * N_pad * 4
                           + sum(int(a.size) * a.dtype.itemsize for a in flat)),
    )

    out_padded = pl.pallas_call(
        _make_mlp_softmax_kernel(n_layers, activation),
        out_shape=jax.ShapeDtypeStruct((B_pad, N_pad), jnp.float32),
        grid_spec=pltpu.PrefetchScalarGridSpec(
            num_scalar_prefetch=0,
            grid=grid,
            in_specs=[x_spec] + resident_specs,
            out_specs=out_spec,
        ),
        compiler_params=pltpu.CompilerParams(
            dimension_semantics=("parallel",),  # shard batch tiles across TCs (v7x)
            vmem_limit_bytes=vmem_limit,
        ),
        cost_estimate=cost,
    )(x_p, *flat)

    # Strip batch padding and the lane-padding columns.
    return out_padded[:B, :out_dim]


def init_params(key, io_dim, h_dims):
    """Deterministic init mimicking torch.nn.Linear default (U[-1/sqrt(in), 1/sqrt(in)]).
    Weights stored as [in, out] (pre-transposed), biases as [1, out]."""
    dims = [io_dim + 1] + list(h_dims) + [io_dim]
    params = []
    for i in range(len(dims) - 1):
        d_in, d_out = dims[i], dims[i + 1]
        key, kw, kb = jax.random.split(key, 3)
        bound = 1.0 / jnp.sqrt(jnp.float32(d_in))
        w = jax.random.uniform(kw, (d_in, d_out), jnp.float32, -bound, bound)
        b = jax.random.uniform(kb, (1, d_out), jnp.float32, -bound, bound)
        params.append((w, b))
    return params


def _reference_forward(x, params, activation="relu"):
    act = _activation(activation)
    h = x
    for li, (w, b) in enumerate(params):
        h = h @ w + b
        if li < len(params) - 1:
            h = act(h)
    return jax.nn.softmax(h, axis=-1)


if __name__ == "__main__":
    io_dim = 16          # e.g. a 4x4 Hex board -> io_dim = size**2
    h_dims = [32, 32]
    batch = 8

    key = jax.random.PRNGKey(0)
    key, kx = jax.random.split(key)
    x = jax.random.normal(kx, (batch, io_dim + 1), jnp.float32)
    params = init_params(key, io_dim, h_dims)

    probs = jax.block_until_ready(ann_forward(x, params))
    ref = _reference_forward(x, params)

    assert probs.shape == (batch, io_dim)
    # rows sum to ~1 (approx reciprocal -> ~1e-3 relative)
    assert jnp.allclose(jnp.sum(probs, axis=-1), 1.0, atol=1e-2)
    # matches f32 reference within bf16/approx-recip tolerance
    assert jnp.allclose(probs, ref, atol=2e-2, rtol=2e-2), \
        float(jnp.max(jnp.abs(probs - ref)))

    print("KERNEL_OK")
</pallas_src>

<mosaic_0001>
module attributes {stable_mosaic.version = 11 : i64} {
  func.func @kernel(%arg0: i32, %arg1: memref<8x24xbf16, #tpu.memory_space<vmem>>, %arg2: memref<24x32xbf16, #tpu.memory_space<vmem>>, %arg3: memref<1x32xf32, #tpu.memory_space<vmem>>, %arg4: memref<32x32xbf16, #tpu.memory_space<vmem>>, %arg5: memref<1x32xf32, #tpu.memory_space<vmem>>, %arg6: memref<32x128xbf16, #tpu.memory_space<vmem>>, %arg7: memref<1x128xf32, #tpu.memory_space<vmem>>, %arg8: memref<8x128xf32, #tpu.memory_space<vmem>>) attributes {dimension_semantics = [#tpu.dimension_semantics<parallel>], iteration_bounds = array<i64: 1>, scalar_prefetch = 0 : i64, scratch_operands = 0 : i64, tpu.core_type = #tpu.core_type<tc>, window_params = [{transform_indices = @transform_0, window_bounds = array<i64: 8, 24>}, {pipeline_mode = #tpu.pipeline_mode<synchronous>, transform_indices = @transform_1, window_bounds = array<i64: 24, 32>}, {pipeline_mode = #tpu.pipeline_mode<synchronous>, transform_indices = @transform_2, window_bounds = array<i64: 1, 32>}, {pipeline_mode = #tpu.pipeline_mode<synchronous>, transform_indices = @transform_3, window_bounds = array<i64: 32, 32>}, {pipeline_mode = #tpu.pipeline_mode<synchronous>, transform_indices = @transform_4, window_bounds = array<i64: 1, 32>}, {pipeline_mode = #tpu.pipeline_mode<synchronous>, transform_indices = @transform_5, window_bounds = array<i64: 32, 128>}, {pipeline_mode = #tpu.pipeline_mode<synchronous>, transform_indices = @transform_6, window_bounds = array<i64: 1, 128>}, {transform_indices = @transform_7, window_bounds = array<i64: 8, 128>}]} {
    %c0 = arith.constant 0 : index
    %c0_0 = arith.constant 0 : index
    %0 = vector.load %arg1[%c0, %c0_0] : memref<8x24xbf16, #tpu.memory_space<vmem>>, vector<8x24xbf16>
    %c0_1 = arith.constant 0 : index
    %c0_2 = arith.constant 0 : index
    %1 = vector.load %arg2[%c0_1, %c0_2] : memref<24x32xbf16, #tpu.memory_space<vmem>>, vector<24x32xbf16>
    %c0_3 = arith.constant 0 : index
    %c0_4 = arith.constant 0 : index
    %2 = vector.load %arg3[%c0_3, %c0_4] : memref<1x32xf32, #tpu.memory_space<vmem>>, vector<1x32xf32>
    %cst = arith.constant dense<0.000000e+00> : vector<8x32xf32>
    %3 = tpu.matmul %0, %1, %cst {dimension_numbers = #tpu.dot_dimension_numbers<[1], [0], [0], [1], [0, 0, 1, 1], [], []>} : vector<8x24xbf16>, vector<24x32xbf16>, vector<8x32xf32> -> vector<8x32xf32>
    %4 = vector.broadcast %2 : vector<1x32xf32> to vector<8x32xf32>
    %5 = arith.addf %3, %4 : vector<8x32xf32>
    %cst_5 = arith.constant 0.000000e+00 : f32
    %6 = vector.broadcast %cst_5 : f32 to vector<8x32xf32>
    %7 = arith.maximumf %5, %6 : vector<8x32xf32>
    %c0_6 = arith.constant 0 : index
    %c0_7 = arith.constant 0 : index
    %8 = vector.load %arg4[%c0_6, %c0_7] : memref<32x32xbf16, #tpu.memory_space<vmem>>, vector<32x32xbf16>
    %c0_8 = arith.constant 0 : index
    %c0_9 = arith.constant 0 : index
    %9 = vector.load %arg5[%c0_8, %c0_9] : memref<1x32xf32, #tpu.memory_space<vmem>>, vector<1x32xf32>
    %10 = arith.truncf %7 : vector<8x32xf32> to vector<8x32xbf16>
    %cst_10 = arith.constant dense<0.000000e+00> : vector<8x32xf32>
    %11 = tpu.matmul %10, %8, %cst_10 {dimension_numbers = #tpu.dot_dimension_numbers<[1], [0], [0], [1], [0, 0, 1, 1], [], []>} : vector<8x32xbf16>, vector<32x32xbf16>, vector<8x32xf32> -> vector<8x32xf32>
    %12 = vector.broadcast %9 : vector<1x32xf32> to vector<8x32xf32>
    %13 = arith.addf %11, %12 : vector<8x32xf32>
    %cst_11 = arith.constant 0.000000e+00 : f32
    %14 = vector.broadcast %cst_11 : f32 to vector<8x32xf32>
    %15 = arith.maximumf %13, %14 : vector<8x32xf32>
    %c0_12 = arith.constant 0 : index
    %c0_13 = arith.constant 0 : index
    %16 = vector.load %arg6[%c0_12, %c0_13] : memref<32x128xbf16, #tpu.memory_space<vmem>>, vector<32x128xbf16>
    %c0_14 = arith.constant 0 : index
    %c0_15 = arith.constant 0 : index
    %17 = vector.load %arg7[%c0_14, %c0_15] : memref<1x128xf32, #tpu.memory_space<vmem>>, vector<1x128xf32>
    %18 = arith.truncf %15 : vector<8x32xf32> to vector<8x32xbf16>
    %cst_16 = arith.constant dense<0.000000e+00> : vector<8x128xf32>
    %19 = tpu.matmul %18, %16, %cst_16 {dimension_numbers = #tpu.dot_dimension_numbers<[1], [0], [0], [1], [0, 0, 1, 1], [], []>} : vector<8x32xbf16>, vector<32x128xbf16>, vector<8x128xf32> -> vector<8x128xf32>
    %20 = vector.broadcast %17 : vector<1x128xf32> to vector<8x128xf32>
    %21 = arith.addf %19, %20 : vector<8x128xf32>
    %cst_17 = arith.constant dense<0xFF800000> : vector<8xf32>
    %22 = vector.multi_reduction <maximumf>, %21, %cst_17 [1] : vector<8x128xf32> to vector<8xf32>
    %23 = vector.shape_cast %22 : vector<8xf32> to vector<8x1xf32>
    %24 = vector.broadcast %23 : vector<8x1xf32> to vector<8x128xf32>
    %25 = arith.subf %21, %24 : vector<8x128xf32>
    %26 = math.exp %25 : vector<8x128xf32>
    %cst_18 = arith.constant dense<0.000000e+00> : vector<8xf32>
    %27 = vector.multi_reduction <add>, %26, %cst_18 [1] : vector<8x128xf32> to vector<8xf32>
    %28 = vector.shape_cast %27 : vector<8xf32> to vector<8x1xf32>
    %29 = tpu.reciprocal %28 {approx = true} : vector<8x1xf32> -> vector<8x1xf32>
    %30 = vector.broadcast %29 : vector<8x1xf32> to vector<8x128xf32>
    %31 = arith.mulf %26, %30 : vector<8x128xf32>
    %c0_19 = arith.constant 0 : index
    %c0_20 = arith.constant 0 : index
    %32 = vector.load %arg8[%c0_19, %c0_20] : memref<8x128xf32, #tpu.memory_space<vmem>>, vector<8x128xf32>
    tpu.vector_store %arg8[%c0_19, %c0_20], %31 {strides = array<i32>} : memref<8x128xf32, #tpu.memory_space<vmem>>, vector<8x128xf32>,
    return
  }
  func.func @transform_0(%arg0: i32) -> (i32, i32) {
    %c0_i32 = arith.constant 0 : i32
    %c0_i32_0 = arith.constant 0 : i32
    return %arg0, %c0_i32 : i32, i32
  }
  func.func @transform_1(%arg0: i32) -> (i32, i32) {
    %c0_i32 = arith.constant 0 : i32
    %c0_i32_0 = arith.constant 0 : i32
    %c0_i32_1 = arith.constant 0 : i32
    return %c0_i32, %c0_i32_0 : i32, i32
  }
  func.func @transform_2(%arg0: i32) -> (i32, i32) {
    %c0_i32 = arith.constant 0 : i32
    %c0_i32_0 = arith.constant 0 : i32
    %c0_i32_1 = arith.constant 0 : i32
    return %c0_i32, %c0_i32_0 : i32, i32
  }
  func.func @transform_3(%arg0: i32) -> (i32, i32) {
    %c0_i32 = arith.constant 0 : i32
    %c0_i32_0 = arith.constant 0 : i32
    %c0_i32_1 = arith.constant 0 : i32
    return %c0_i32, %c0_i32_0 : i32, i32
  }
  func.func @transform_4(%arg0: i32) -> (i32, i32) {
    %c0_i32 = arith.constant 0 : i32
    %c0_i32_0 = arith.constant 0 : i32
    %c0_i32_1 = arith.constant 0 : i32
    return %c0_i32, %c0_i32_0 : i32, i32
  }
  func.func @transform_5(%arg0: i32) -> (i32, i32) {
    %c0_i32 = arith.constant 0 : i32
    %c0_i32_0 = arith.constant 0 : i32
    %c0_i32_1 = arith.constant 0 : i32
    return %c0_i32, %c0_i32_0 : i32, i32
  }
  func.func @transform_6(%arg0: i32) -> (i32, i32) {
    %c0_i32 = arith.constant 0 : i32
    %c0_i32_0 = arith.constant 0 : i32
    %c0_i32_1 = arith.constant 0 : i32
    return %c0_i32, %c0_i32_0 : i32, i32
  }
  func.func @transform_7(%arg0: i32) -> (i32, i32) {
    %c0_i32 = arith.constant 0 : i32
    %c0_i32_0 = arith.constant 0 : i32
    return %arg0, %c0_i32 : i32, i32
  }
}

</mosaic_0001>

<llo_original>
// kernel: tpu_custom_call.1
$region0: #{tpu_custom_call.1}
  #allocation0 [shape = 'u32[]', space=smem, size = 0x4, offset = 0x4, fixed_abs, tag = 'smem constant byte address 0x4 - core index']
  #allocation1 [shape = 'u32[72,128]{1,0:T(1,128)}', space=vmem, size = 0x9000, scoped, tag = 'internal scratch']
  %s0 = inlined_call_operand.hbm [shape: bf16[8,24], index: 0, kind: input, shape index: {}]
  %s1 = inlined_call_operand.hbm [shape: bf16[24,32], index: 1, kind: input, shape index: {}]
  %s2 = inlined_call_operand.vmem [shape: f32[1,32], index: 2, kind: input, shape index: {}]
  %s3 = inlined_call_operand.hbm [shape: bf16[32,32], index: 3, kind: input, shape index: {}]
  %s4 = inlined_call_operand.vmem [shape: f32[1,32], index: 4, kind: input, shape index: {}]
  %s5 = inlined_call_operand.hbm [shape: bf16[32,128], index: 5, kind: input, shape index: {}]
  %s6 = inlined_call_operand.vmem [shape: f32[1,128], index: 6, kind: input, shape index: {}]
  %s7 = inlined_call_operand.hbm [shape: f32[8,128], index: 7, kind: output, shape index: {}]
  %s8 = sld [smem:[#allocation0]]
  $region54: #{tpu_custom_call.1} parent=0
    _
  %s10 = ssub.s32 1, %s8
  %s11 = scalar_select 0, %s10, %s8
  $region1: #{tpu_custom_call.1} parent=0
    #allocation2 [shape = 'u8[2048]{0}', space=vmem, size = 0x800, scoped, tag = 'input window, operand 0, single buffered']
    #allocation3 [shape = 's32[1]{0}', space=sflag, size = 0x4, scoped, tag = 'scoped memory for tpu_custom_call.1']
    #allocation4 [shape = 's32[1]{0}', space=sflag, size = 0x4, scoped, tag = 'scoped memory for tpu_custom_call.1']
    #allocation5 [shape = 'u8[6144]{0}', space=vmem, size = 0x1800, scoped, tag = 'input window, operand 1, single buffered']
    #allocation6 [shape = 's32[1]{0}', space=sflag, size = 0x4, scoped, tag = 'scoped memory for tpu_custom_call.1']
    #allocation7 [shape = 'u8[8192]{0}', space=vmem, size = 0x2000, scoped, tag = 'input window, operand 3, single buffered']
    #allocation8 [shape = 'u8[8192]{0}', space=vmem, size = 0x2000, scoped, tag = 'input window, operand 5, single buffered']
    #allocation9 [shape = 's32[1]{0}', space=sflag, size = 0x4, scoped, tag = 'scoped memory for tpu_custom_call.1']
    #allocation10 [shape = 'u8[4096]{0}', space=vmem, size = 0x1000, scoped, tag = 'output window, operand 0, single buffered']
    %12 = vsyncpa [#allocation3], 0
    %13 = vsyncpa [#allocation6], 0
    %14 = vsyncpa [#allocation9], 0
    %15 = vsyncpa [#allocation4], 0
    // Predicated region
    $region2: #{tpu_custom_call.1} parent=1 // pred_check
      _
    $region3: #{tpu_custom_call.1} parent=1 // pred_check_branch
      %17 = sbr.rel (0) target = $region5
    $region4: #{tpu_custom_call.1} parent=1 // pred_region
      %19 = vsyncadd [#allocation3], 0
      %s21 = sshll.u32 %s0, 4
      %s22 = int_to_ptr.hbm [resolvable:$true] %s21
      %s23 = sshll.u32 [#allocation2], 4
      %s24 = int_to_ptr.vmem [resolvable:$true] %s23
      %26 = dma.hbm_to_vmem [thread:$0]  %s22, 64, %s24, [#allocation3]
    $region5: #{tpu_custom_call.1} parent=1 // pred_fallthru
      _
    // Predicated region
    $region6: #{tpu_custom_call.1} parent=1 // pred_check
      _
    $region7: #{tpu_custom_call.1} parent=1 // pred_check_branch
      %28 = sbr.rel (0) target = $region9
    $region8: #{tpu_custom_call.1} parent=1 // pred_region
      %30 = vsyncadd [#allocation6], 0
      %s31 = sshll.u32 %s1, 4
      %s32 = int_to_ptr.hbm [resolvable:$true] %s31
      %s33 = sshll.u32 [#allocation5], 4
      %s34 = int_to_ptr.vmem [resolvable:$true] %s33
      %39 = dma.hbm_to_vmem [thread:$0]  %s32, 192, %s34, [#allocation6], 64, 64, 4
    $region9: #{tpu_custom_call.1} parent=1 // pred_fallthru
      _
    // Predicated region
    $region10: #{tpu_custom_call.1} parent=1 // pred_check
      _
    $region11: #{tpu_custom_call.1} parent=1 // pred_check_branch
      %41 = sbr.rel (0) target = $region13
    $region12: #{tpu_custom_call.1} parent=1 // pred_region
      _
    $region13: #{tpu_custom_call.1} parent=1 // pred_fallthru
      _
    // Predicated region
    $region14: #{tpu_custom_call.1} parent=1 // pred_check
      _
    $region15: #{tpu_custom_call.1} parent=1 // pred_check_branch
      %43 = sbr.rel (0) target = $region17
    $region16: #{tpu_custom_call.1} parent=1 // pred_region
      %45 = vsyncadd [#allocation6], 0
      %s46 = sshll.u32 %s3, 4
      %s47 = int_to_ptr.hbm [resolvable:$true] %s46
      %s48 = sshll.u32 [#allocation7], 4
      %s49 = int_to_ptr.vmem [resolvable:$true] %s48
      %54 = dma.hbm_to_vmem [thread:$0]  %s47, 256, %s49, [#allocation6], 64, 64, 4
    $region17: #{tpu_custom_call.1} parent=1 // pred_fallthru
      _
    // Predicated region
    $region18: #{tpu_custom_call.1} parent=1 // pred_check
      _
    $region19: #{tpu_custom_call.1} parent=1 // pred_check_branch
      %56 = sbr.rel (0) target = $region21
    $region20: #{tpu_custom_call.1} parent=1 // pred_region
      _
    $region21: #{tpu_custom_call.1} parent=1 // pred_fallthru
      _
    // Predicated region
    $region22: #{tpu_custom_call.1} parent=1 // pred_check
      _
    $region23: #{tpu_custom_call.1} parent=1 // pred_check_branch
      %58 = sbr.rel (0) target = $region25
    $region24: #{tpu_custom_call.1} parent=1 // pred_region
      %60 = vsyncadd [#allocation9], 0
      %s61 = sshll.u32 %s5, 4
      %s62 = int_to_ptr.hbm [resolvable:$true] %s61
      %s63 = sshll.u32 [#allocation8], 4
      %s64 = int_to_ptr.vmem [resolvable:$true] %s63
      %69 = dma.hbm_to_vmem [thread:$0]  %s62, 256, %s64, [#allocation9], 64, 64, 4
    $region25: #{tpu_custom_call.1} parent=1 // pred_fallthru
      _
    // Predicated region
    $region26: #{tpu_custom_call.1} parent=1 // pred_check
      _
    $region27: #{tpu_custom_call.1} parent=1 // pred_check_branch
      %71 = sbr.rel (0) target = $region29
    $region28: #{tpu_custom_call.1} parent=1 // pred_region
      _
    $region29: #{tpu_custom_call.1} parent=1 // pred_fallthru
      _
    // Predicated region
    $region30: #{tpu_custom_call.1} parent=1 // pred_check
      _
    $region31: #{tpu_custom_call.1} parent=1 // pred_check_branch
      %73 = sbr.rel (0) target = $region33
    $region32: #{tpu_custom_call.1} parent=1 // pred_region
      %75 = dma.done [#allocation3], 64
    $region33: #{tpu_custom_call.1} parent=1 // pred_fallthru
      _
    // Predicated region
    $region34: #{tpu_custom_call.1} parent=1 // pred_check
      _
    $region35: #{tpu_custom_call.1} parent=1 // pred_check_branch
      %77 = sbr.rel (0) target = $region37
    $region36: #{tpu_custom_call.1} parent=1 // pred_region
      %79 = dma.done [#allocation6], 192
    $region37: #{tpu_custom_call.1} parent=1 // pred_fallthru
      _
    // Predicated region
    $region38: #{tpu_custom_call.1} parent=1 // pred_check
      _
    $region39: #{tpu_custom_call.1} parent=1 // pred_check_branch
      %81 = sbr.rel (0) target = $region41
    $region40: #{tpu_custom_call.1} parent=1 // pred_region
      %83 = dma.done [#allocation6], 256
    $region41: #{tpu_custom_call.1} parent=1 // pred_fallthru
      _
    // Predicated region
    $region42: #{tpu_custom_call.1} parent=1 // pred_check
      _
    $region43: #{tpu_custom_call.1} parent=1 // pred_check_branch
      %85 = sbr.rel (0) target = $region45
    $region44: #{tpu_custom_call.1} parent=1 // pred_region
      %87 = dma.done [#allocation9], 256
    $region45: #{tpu_custom_call.1} parent=1 // pred_fallthru
      _
    %v89 = vld [vmem:[#allocation2] sm:$0xf]
    %v90 = vld [vmem:[#allocation5] sm:$0xf]
    %v91 = vld [vmem:[#allocation5 + $0x4] sm:$0xf]
    %v92 = vld [vmem:[#allocation5 + $0x8] sm:$0xf]
    %v93 = vld [vmem:[%s2] sm:$0x1]
    %v95 = vperm.slane %v93, 0
    %v100 = vunpack.c.l.b16 %v90
    %v101 = vunpack.c.l.b16 %v91
    %v102 = vunpack.c.l.b16 %v92
    %v103 = vpack.c.b16 %v101, %v100
    %v104 = vpack.c.b16 %v102, %v102
    %vm106 = vcmask 195584
    %v108 = vsel %vm106, %v89, 0
    %vm110 = vcmask 1043456
    %v112 = vsel %vm110, %v104, 0
    %114 = vmatpush.bf16.msra.mxu0 0
    %115 = vmatpush.bf16.msra.mxu0 0
    %116 = vmatpush.bf16.msra.mxu0 0
    %117 = vmatpush.bf16.msra.mxu0 0
    %118 = vmatpush.bf16.msra.mxu0 0
    %119 = vmatpush.bf16.msra.mxu0 0
    %120 = vmatpush.bf16.msra.mxu0 %v112
    %121 = vmatpush.bf16.msra.mxu0 %v103
    %122 = vmatmul.bf16.gmra.mxu0 %v108
    %v123 = vpop.f32.mrf.mxu0
    %v124 = vadd.f32 %v95, %v123
    %v125 = vpop.f32.mrf.mxu0
    %126 = vdwg.mxu0
    %v127 = vmax.f32 %v124, 0.0
    %v128 = vld [vmem:[#allocation7] sm:$0xf]
    %v129 = vld [vmem:[#allocation7 + $0x4] sm:$0xf]
    %v130 = vld [vmem:[#allocation7 + $0x8] sm:$0xf]
    %v131 = vld [vmem:[#allocation7 + $0xc] sm:$0xf]
    %v132 = vld [vmem:[%s4] sm:$0x1]
    %v133 = vpack.c.bf16 %v127, %v127
    %v135 = vperm.slane %v132, 0
    %v141 = vunpack.c.l.b16 %v128
    %v142 = vunpack.c.l.b16 %v129
    %v143 = vunpack.c.l.b16 %v130
    %v144 = vunpack.c.l.b16 %v131
    %v145 = vpack.c.b16 %v142, %v141
    %v146 = vpack.c.b16 %v144, %v143
    %vm149 = vcmask 261120
    %v151 = vsel %vm149, %v133, 0
    %153 = vmatpush.bf16.msra.mxu0 0
    %154 = vmatpush.bf16.msra.mxu0 0
    %155 = vmatpush.bf16.msra.mxu0 0
    %156 = vmatpush.bf16.msra.mxu0 0
    %157 = vmatpush.bf16.msra.mxu0 0
    %158 = vmatpush.bf16.msra.mxu0 0
    %159 = vmatpush.bf16.msra.mxu0 %v146
    %160 = vmatpush.bf16.msra.mxu0 %v145
    %161 = vmatmul.bf16.gmra.mxu0 %v151
    %v162 = vpop.f32.mrf.mxu0
    %v163 = vadd.f32 %v135, %v162
    %v164 = vpop.f32.mrf.mxu0
    %165 = vdwg.mxu0
    %v166 = vmax.f32 %v163, 0.0
    %v167 = vld [vmem:[#allocation8] sm:$0xf]
    %v168 = vld [vmem:[#allocation8 + $0x4] sm:$0xf]
    %v169 = vld [vmem:[#allocation8 + $0x8] sm:$0xf]
    %v170 = vld [vmem:[#allocation8 + $0xc] sm:$0xf]
    %v171 = vld [vmem:[%s6] sm:$0x1]
    %v172 = vpack.c.bf16 %v166, %v166
    %v174 = vperm.slane %v171, 0
    %v180 = vunpack.c.l.b16 %v167
    %v181 = vunpack.c.l.b16 %v168
    %v182 = vunpack.c.l.b16 %v169
    %v183 = vunpack.c.l.b16 %v170
    %v184 = vpack.c.b16 %v181, %v180
    %v185 = vpack.c.b16 %v183, %v182
    %v189 = vsel %vm149, %v172, 0
    %191 = vmatpush.bf16.msra.mxu0 0
    %192 = vmatpush.bf16.msra.mxu0 0
    %193 = vmatpush.bf16.msra.mxu0 0
    %194 = vmatpush.bf16.msra.mxu0 0
    %195 = vmatpush.bf16.msra.mxu0 0
    %196 = vmatpush.bf16.msra.mxu0 0
    %197 = vmatpush.bf16.msra.mxu0 %v185
    %198 = vmatpush.bf16.msra.mxu0 %v184
    %199 = vmatmul.bf16.gmra.mxu0 %v189
    %v200 = vpop.f32.mrf.mxu0
    %v201 = vadd.f32 %v174, %v200
    %v202 = vpop.f32.mrf.mxu0
    %203 = vdwg.mxu0
    %204 = vmax.xlane.f32.xlu0 %v201
    %v205 = vpop.xlane.xlu0 %204
    %v206 = vsub.f32 %v201, %v205
    %v207 = vmul.f32 %v206, 1.442695
    %v208 = vpow.pop %v207
    %209 = vadd.xlane.f32.xlu0 %v208
    %v210 = vpop.xlane.xlu0 %209
    %v211 = vrcp.pop %v210
    %v212 = vmul.f32 %v208, %v211
    %213 = vst [vmem:[#allocation10] sm:$0xff] %v212
    // Predicated region
    $region46: #{tpu_custom_call.1} parent=1 // pred_check
      _
    $region47: #{tpu_custom_call.1} parent=1 // pred_check_branch
      %215 = sbr.rel (0) target = $region49
    $region48: #{tpu_custom_call.1} parent=1 // pred_region
      %217 = vsyncadd [#allocation4], 0
      %s219 = sshll.u32 [#allocation10], 4
      %s220 = int_to_ptr.vmem [resolvable:$true] %s219
      %s221 = sshll.u32 %s7, 4
      %s222 = int_to_ptr.hbm [resolvable:$true] %s221
      %224 = dma.vmem_to_hbm [thread:$0]  %s220, 128, %s222, [#allocation4]
    $region49: #{tpu_custom_call.1} parent=1 // pred_fallthru
      _
    // Predicated region
    $region50: #{tpu_custom_call.1} parent=1 // pred_check
      _
    $region51: #{tpu_custom_call.1} parent=1 // pred_check_branch
      %226 = sbr.rel (0) target = $region53
    $region52: #{tpu_custom_call.1} parent=1 // pred_region
      %228 = dma.done [#allocation4], 128
    $region53: #{tpu_custom_call.1} parent=1 // pred_fallthru
      _
    %229 = vsyncpa [#allocation3], 1
    %230 = vsyncpa [#allocation6], 1
    %231 = vsyncpa [#allocation9], 1
    %232 = vsyncpa [#allocation4], 1

</llo_original>
